<compile_context>
chip_gen: v6e
topology: v6e:2x2x1
jax: 0.10.0
libtpu: 0.0.40
codegen_flags: <defaults>
</compile_context>

<pallas_src>
import functools

import jax
import jax.numpy as jnp
import numpy as np
from jax.experimental import pallas as pl
from jax.experimental.pallas import tpu as pltpu

_SUBLANES = 8          # f32 sublane tile / output-slab rows
_LANES = 128
_MAX_TILE_ROWS = 8192  # raised from 1024 per perf review


def _round_up(x, m):
    return ((x + m - 1) // m) * m


def _native_sublanes(dtype):
    # Native sublane tile: 8 rows for 32-bit, 16 for bf16/f16, 32 for int8/fp8.
    itemsize = jnp.dtype(dtype).itemsize
    return _SUBLANES * max(1, 4 // max(itemsize, 1))


def _vmem_budget():
    """Returns (per-tile f32-equivalent byte budget, vmem_limit_bytes).

    Live VMEM ~= 2 x double-buffered native-dtype logits tiles + ~3 f32
    full-tile intermediates, so the budget is sized against the generation's
    physical VMEM (v5e/v6e: 128 MiB, v7x: 64 MiB per TensorCore).
    """
    try:
        vmem = pltpu.get_tpu_info().vmem_capacity_bytes
    except Exception:  # pragma: no cover - conservative fallback
        vmem = 64 * 1024 * 1024
    if vmem >= 128 * 1024 * 1024:                      # v5e / v6e
        return 12 * 1024 * 1024, 64 * 1024 * 1024
    return 8 * 1024 * 1024, 48 * 1024 * 1024           # v7x (64 MiB / TC)


def _easy2hard_kernel(epoch_ref, logits_ref, target_ref, out_ref, *,
                      ban_target, n, tile_n):
    i = pl.program_id(0)

    logits = logits_ref[...].astype(jnp.float32)        # [tile_n, C], widen in-register
    tgt = target_ref[...]                                # [tile_n, 1] int32
    tn, c = logits.shape

    # --- numerically stable logsumexp; `shifted` reused for the one-hot pick ---
    row_max = jnp.max(logits, axis=-1, keepdims=True)                       # [tn, 1]
    shifted = logits - row_max                                               # [tn, C]
    sum_exp = jnp.sum(jnp.exp(shifted), axis=-1, keepdims=True)              # [tn, 1]

    # gather shifted[i, target[i]] via a one-hot lane compare
    class_ids = jax.lax.broadcasted_iota(jnp.int32, (tn, c), 1)
    picked_shifted = jnp.sum(jnp.where(class_ids == tgt, shifted, 0.0),
                             axis=-1, keepdims=True)                         # [tn, 1]
    # ce = (row_max + log(sum_exp)) - (row_max + picked_shifted)
    ce = jnp.log(sum_exp) - picked_shifted                                   # [tn, 1]

    # --- epoch-dependent masking, hoisted to scalars (epoch lives in SMEM) ---
    epoch = epoch_ref[0]
    no_mask = (epoch % 5) == 0          # scalar
    le80 = epoch <= 80                  # scalar
    is_ban = tgt == ban_target          # [tn, 1]
    # drop rows where (epoch % 5 != 0) and (is_ban == (epoch <= 80)):
    #   epoch <= 80 -> zero the ban-target rows; epoch > 80 -> zero the rest.
    keep = jnp.logical_or(no_mask, is_ban != le80)

    # --- guard padded rows of the last partial batch tile (keep as where, not *0) ---
    row_ids = i * tile_n + jax.lax.broadcasted_iota(jnp.int32, (tn, 1), 0)
    keep = jnp.logical_and(keep, row_ids < n)

    tile_sum = jnp.sum(jnp.where(keep, ce, 0.0))
    # lane-dense (8, 128) per-tile partial-sum block (unmasked vst).
    out_ref[...] = jnp.broadcast_to(tile_sum, out_ref.shape).astype(jnp.float32)


def easy2hard_loss(output, target, epoch, ban_target=3, tile_n=None):
    """output: [N, C] logits (any float dtype, streamed in native dtype);
    target: [N] ints; epoch: python/int32 scalar."""
    n, c = output.shape
    sublane = _native_sublanes(output.dtype)
    budget_bytes, vmem_limit = _vmem_budget()
    n_pad = max(sublane, _round_up(n, sublane))

    if tile_n is None:
        # dtype-aware sizing in f32-equivalent bytes (kernel widens + f32 temps).
        rows = budget_bytes // max(c * 4, 1)
        rows = max(sublane, min(_MAX_TILE_ROWS, (rows // sublane) * sublane))
        # keep >= 2 grid steps when possible so both v7x TensorCores get work
        if n > sublane and rows >= n:
            rows = max(sublane, _round_up(pl.cdiv(n, 2), sublane))
        tile_n = min(rows, n_pad)
    else:
        tile_n = min(n_pad, max(sublane, _round_up(tile_n, sublane)))

    num_tiles = pl.cdiv(n, tile_n)

    target_2d = target.astype(jnp.int32).reshape(n, 1)
    epoch_arr = jnp.asarray(epoch, dtype=jnp.int32).reshape(1)

    kernel = functools.partial(_easy2hard_kernel, ban_target=ban_target,
                               n=n, tile_n=tile_n)

    itemsize = jnp.dtype(output.dtype).itemsize
    cost = pl.CostEstimate(
        flops=6 * n * c,
        transcendentals=n * c,
        bytes_accessed=n * c * itemsize + n * 4 + num_tiles * _SUBLANES * _LANES * 4,
    )

    partial_sums = pl.pallas_call(
        kernel,
        out_shape=jax.ShapeDtypeStruct((num_tiles * _SUBLANES, _LANES), jnp.float32),
        grid_spec=pltpu.PrefetchScalarGridSpec(
            num_scalar_prefetch=1,                               # epoch -> SMEM
            grid=(num_tiles,),
            in_specs=[
                pl.BlockSpec((tile_n, c), lambda i, ep: (i, 0)),   # logits (native dtype)
                pl.BlockSpec((tile_n, 1), lambda i, ep: (i, 0)),   # target
            ],
            out_specs=pl.BlockSpec((_SUBLANES, _LANES), lambda i, ep: (i, 0)),
        ),
        compiler_params=pltpu.CompilerParams(
            dimension_semantics=("parallel",),    # independent tiles -> both v7x TCs
            vmem_limit_bytes=vmem_limit,
        ),
        cost_estimate=cost,
    )(epoch_arr, output, target_2d)

    # every element of a tile's (8, 128) block holds that tile's partial sum;
    # a plain dense sum over the slab avoids a strided gather.
    return jnp.sum(partial_sums) / jnp.float32(n * _SUBLANES * _LANES)


def _reference(output, target, epoch, ban_target=3):
    log_sm = jax.nn.log_softmax(output.astype(jnp.float32), axis=-1)
    ce = -jnp.take_along_axis(log_sm, target[:, None].astype(jnp.int32), axis=1)[:, 0]
    if epoch <= 80:
        if epoch % 5 != 0:
            ce = jnp.where(target == ban_target, 0.0, ce)
    elif epoch % 5 != 0:
        ce = jnp.where(target != ban_target, 0.0, ce)
    return jnp.mean(ce)


if __name__ == "__main__":
    key = jax.random.PRNGKey(0)
    k1, k2, k3, k4 = jax.random.split(key, 4)

    ban_target = 3

    # --- small multi-tile case with a ragged last tile (N=13, tile_n=8) ---
    N, C = 13, 32
    logits = jax.random.normal(k1, (N, C), dtype=jnp.float32)
    target = jax.random.randint(k2, (N,), 0, C, dtype=jnp.int32)
    target = target.at[0].set(ban_target)   # make sure the ban path is exercised

    # epoch branches: mask ban (7), mask non-ban (81), no mask (85, 10)
    for ep in (7, 81, 85, 10):
        loss = jax.block_until_ready(
            easy2hard_loss(logits, target, ep, ban_target=ban_target, tile_n=8))
        ref = _reference(logits, target, ep, ban_target=ban_target)
        np.testing.assert_allclose(np.asarray(loss), np.asarray(ref),
                                   rtol=1e-5, atol=1e-5)

    # --- auto tile-size path (grid kept >= 2 steps), N multiple of sublane ---
    N2, C2 = 64, 128
    logits2 = jax.random.normal(k3, (N2, C2), dtype=jnp.float32)
    target2 = jax.random.randint(k4, (N2,), 0, C2, dtype=jnp.int32)
    target2 = target2.at[1].set(ban_target)
    for ep in (7, 81, 10):
        loss = jax.block_until_ready(
            easy2hard_loss(logits2, target2, ep, ban_target=ban_target))
        ref = _reference(logits2, target2, ep, ban_target=ban_target)
        np.testing.assert_allclose(np.asarray(loss), np.asarray(ref),
                                   rtol=1e-5, atol=1e-5)

    # --- bf16 logits streamed natively; tile_n auto-rounds to the (16,128) tile ---
    logits_bf16 = logits.astype(jnp.bfloat16)
    for ep in (7, 81, 10):
        loss = jax.block_until_ready(
            easy2hard_loss(logits_bf16, target, ep, ban_target=ban_target))
        ref = _reference(logits_bf16, target, ep, ban_target=ban_target)
        np.testing.assert_allclose(np.asarray(loss), np.asarray(ref),
                                   rtol=1e-3, atol=1e-3)

    print("KERNEL_OK")
</pallas_src>

<mosaic_0001>
module attributes {stable_mosaic.version = 11 : i64} {
  func.func @_easy2hard_kernel(%arg0: i32, %arg1: memref<1xi32, #tpu.memory_space<smem>>, %arg2: memref<8x32xf32, #tpu.memory_space<vmem>>, %arg3: memref<8x1xi32, #tpu.memory_space<vmem>>, %arg4: memref<8x128xf32, #tpu.memory_space<vmem>>) attributes {dimension_semantics = [#tpu.dimension_semantics<parallel>], iteration_bounds = array<i64: 2>, scalar_prefetch = 1 : i64, scratch_operands = 0 : i64, tpu.core_type = #tpu.core_type<tc>, window_params = [{transform_indices = @transform_0, window_bounds = array<i64: 8, 32>}, {transform_indices = @transform_1, window_bounds = array<i64: 8, 1>}, {transform_indices = @transform_2, window_bounds = array<i64: 8, 128>}]} {
    %c0 = arith.constant 0 : index
    %c0_0 = arith.constant 0 : index
    %0 = vector.load %arg2[%c0, %c0_0] : memref<8x32xf32, #tpu.memory_space<vmem>>, vector<8x32xf32>
    %c0_1 = arith.constant 0 : index
    %c0_2 = arith.constant 0 : index
    %1 = vector.load %arg3[%c0_1, %c0_2] : memref<8x1xi32, #tpu.memory_space<vmem>>, vector<8x1xi32>
    %cst = arith.constant dense<0xFF800000> : vector<8xf32>
    %2 = vector.multi_reduction <maximumf>, %0, %cst [1] : vector<8x32xf32> to vector<8xf32>
    %3 = vector.shape_cast %2 : vector<8xf32> to vector<8x1xf32>
    %4 = vector.broadcast %3 : vector<8x1xf32> to vector<8x32xf32>
    %5 = arith.subf %0, %4 : vector<8x32xf32>
    %6 = math.exp %5 : vector<8x32xf32>
    %cst_3 = arith.constant dense<0.000000e+00> : vector<8xf32>
    %7 = vector.multi_reduction <add>, %6, %cst_3 [1] : vector<8x32xf32> to vector<8xf32>
    %8 = vector.shape_cast %7 : vector<8xf32> to vector<8x1xf32>
    %9 = tpu.iota {dimensions = array<i32: 1>} : vector<8x32xi32>
    %10 = vector.broadcast %1 : vector<8x1xi32> to vector<8x32xi32>
    %11 = arith.cmpi eq, %9, %10 : vector<8x32xi32>
    %cst_4 = arith.constant 0.000000e+00 : f32
    %12 = vector.broadcast %cst_4 : f32 to vector<8x32xf32>
    %13 = arith.select %11, %5, %12 : vector<8x32xi1>, vector<8x32xf32>
    %cst_5 = arith.constant dense<0.000000e+00> : vector<8xf32>
    %14 = vector.multi_reduction <add>, %13, %cst_5 [1] : vector<8x32xf32> to vector<8xf32>
    %15 = vector.shape_cast %14 : vector<8xf32> to vector<8x1xf32>
    %16 = math.log %8 : vector<8x1xf32>
    %17 = arith.subf %16, %15 : vector<8x1xf32>
    %c0_6 = arith.constant 0 : index
    %18 = memref.load %arg1[%c0_6] : memref<1xi32, #tpu.memory_space<smem>>
    %c5_i32 = arith.constant 5 : i32
    %c0_i32 = arith.constant 0 : i32
    %19 = arith.cmpi eq, %c5_i32, %c0_i32 : i32
    %c1_i32 = arith.constant 1 : i32
    %20 = arith.select %19, %c1_i32, %c5_i32 : i32
    %21 = arith.remsi %18, %20 : i32
    %c0_i32_7 = arith.constant 0 : i32
    %22 = arith.cmpi ne, %21, %c0_i32_7 : i32
    %c0_i32_8 = arith.constant 0 : i32
    %23 = arith.cmpi slt, %21, %c0_i32_8 : i32
    %c0_i32_9 = arith.constant 0 : i32
    %24 = arith.cmpi slt, %20, %c0_i32_9 : i32
    %25 = arith.xori %23, %24 : i1
    %26 = arith.andi %25, %22 : i1
    %27 = arith.addi %21, %20 : i32
    %28 = arith.select %26, %27, %21 : i32
    %c0_i32_10 = arith.constant 0 : i32
    %29 = arith.cmpi eq, %28, %c0_i32_10 : i32
    %c80_i32 = arith.constant 80 : i32
    %30 = arith.cmpi sle, %18, %c80_i32 : i32
    %c3_i32 = arith.constant 3 : i32
    %31 = vector.broadcast %c3_i32 : i32 to vector<8x1xi32>
    %32 = arith.cmpi eq, %1, %31 : vector<8x1xi32>
    %33 = vector.broadcast %30 : i1 to vector<8x1xi1>
    %34 = vector.broadcast %33 : vector<8x1xi1> to vector<8x1xi1>
    %35 = arith.xori %32, %34 : vector<8x1xi1>
    %36 = vector.broadcast %29 : i1 to vector<8x1xi1>
    %37 = arith.ori %36, %35 : vector<8x1xi1>
    %c8_i32 = arith.constant 8 : i32
    %38 = arith.muli %arg0, %c8_i32 : i32
    %39 = tpu.iota {dimensions = array<i32: 0>} : vector<8x1xi32>
    %40 = vector.broadcast %38 : i32 to vector<8x1xi32>
    %41 = arith.addi %40, %39 : vector<8x1xi32>
    %c13_i32 = arith.constant 13 : i32
    %42 = vector.broadcast %c13_i32 : i32 to vector<8x1xi32>
    %43 = arith.cmpi slt, %41, %42 : vector<8x1xi32>
    %44 = arith.andi %37, %43 : vector<8x1xi1>
    %cst_11 = arith.constant 0.000000e+00 : f32
    %45 = vector.broadcast %cst_11 : f32 to vector<8x1xf32>
    %46 = arith.select %44, %17, %45 : vector<8x1xi1>, vector<8x1xf32>
    %47 = vector.shape_cast %46 : vector<8x1xf32> to vector<1x8x1xf32>
    %cst_12 = arith.constant dense<0.000000e+00> : vector<1xf32>
    %48 = vector.multi_reduction <add>, %47, %cst_12 [1, 2] : vector<1x8x1xf32> to vector<1xf32>
    %49 = vector.shape_cast %48 : vector<1xf32> to vector<1x1x1xf32>
    %50 = vector.extract %49[0, 0, 0] : f32 from vector<1x1x1xf32>
    %51 = vector.broadcast %50 : f32 to vector<8x128xf32>
    %c0_13 = arith.constant 0 : index
    %c0_14 = arith.constant 0 : index
    %52 = vector.load %arg4[%c0_13, %c0_14] : memref<8x128xf32, #tpu.memory_space<vmem>>, vector<8x128xf32>
    tpu.vector_store %arg4[%c0_13, %c0_14], %51 {strides = array<i32>} : memref<8x128xf32, #tpu.memory_space<vmem>>, vector<8x128xf32>,
    return
  }
  func.func @transform_0(%arg0: i32, %arg1: memref<1xi32, #tpu.memory_space<smem>>) -> (i32, i32) {
    %c0_i32 = arith.constant 0 : i32
    %c0_i32_0 = arith.constant 0 : i32
    return %arg0, %c0_i32 : i32, i32
  }
  func.func @transform_1(%arg0: i32, %arg1: memref<1xi32, #tpu.memory_space<smem>>) -> (i32, i32) {
    %c0_i32 = arith.constant 0 : i32
    %c0_i32_0 = arith.constant 0 : i32
    return %arg0, %c0_i32 : i32, i32
  }
  func.func @transform_2(%arg0: i32, %arg1: memref<1xi32, #tpu.memory_space<smem>>) -> (i32, i32) {
    %c0_i32 = arith.constant 0 : i32
    %c0_i32_0 = arith.constant 0 : i32
    return %arg0, %c0_i32 : i32, i32
  }
}

</mosaic_0001>

<llo_original>
// kernel: tpu_custom_call.1
$region0: #{tpu_custom_call.1}
  #allocation0 [shape = 'u32[]', space=smem, size = 0x4, offset = 0x4, fixed_abs, tag = 'smem constant byte address 0x4 - core index']
  #allocation1 [shape = 'u32[144,128]{1,0:T(1,128)}', space=vmem, size = 0x12000, scoped, tag = 'internal scratch']
  #allocation2 [shape = 's32[1]{0}', space=sflag, size = 0x4, scoped, tag = 'scoped memory for tpu_custom_call.1']
  #allocation3 [shape = 's32[1]{0:T(128)S(6)}', space=smem, size = 0x200, scoped, tag = 'prefetched SMEM operand 0']
  %s0 = inlined_call_operand.<no memory space> [shape: s32[1], index: 0, kind: input, shape index: {}]
  %s1 = inlined_call_operand.vmem [shape: f32[13,32], index: 1, kind: input, shape index: {}]
  %s2 = inlined_call_operand.vmem [shape: s32[13,1], index: 2, kind: input, shape index: {}]
  %s3 = inlined_call_operand.hbm [shape: f32[16,128], index: 3, kind: output, shape index: {}]
  %s4 = sld [smem:[#allocation0]]
  $region41: #{tpu_custom_call.1} parent=0
    _
  %s6 = ssub.s32 1, %s4
  %s7 = scalar_select 0, %s6, %s4
  %8 = sst [smem:[#allocation3]] %s0
  $region1: #{tpu_custom_call.1} parent=0
    #allocation4 [shape = 'u8[8192]{0}', space=vmem, size = 0x2000, scoped, tag = 'output window, operand 0']
    #allocation5 [shape = 's32[2]{0}', space=sflag, size = 0x8, scoped, tag = 'scoped memory for tpu_custom_call.1']
    %9 = vsyncpa [#allocation5], 0
    %s10 = scalar_lea.sflag [#allocation5], 1
    %11 = vsyncpa %s10, 0
    loop: start=0, step=1, limit=4
    $region2: #{tpu_custom_call.1} parent=1 // loop_pre_header
      _
    $region3: #{tpu_custom_call.1} parent=1 // loop_header
      %s13 = sphi 0, %s17
      %p14 = scmp.ge.s32.totalorder %s13, 4
      %s23 = sphi 0, %s25
      %s26 = sphi 0, %s23
      %s27 = sphi 0, %s26
      %s43 = sphi 0, %s27
      %s49 = sphi 0, %s51
      %s52 = sphi 0, %s49
      %s53 = sphi 0, %s52
      %s69 = sphi 0, %s53
      %s75 = sphi 0, %s77
      %s78 = sphi 0, %s75
      %s79 = sphi 0, %s78
      %s95 = sphi 0, %s79
    $region4: #{tpu_custom_call.1} parent=1 // loop_header_branch
      %16 = sbr.rel (%p14) target = $region8
    $region5: #{tpu_custom_call.1} parent=1 // loop_body
      %s18 = ssub.s32 %s13, 1
      %s19 = ssub.s32 %s13, 2
      %s20 = sadd.s32 %s13, 1
      %s21 = ssub.s32 %s13, %s20
      %p22 = scmp.eq.s32.totalorder %s21, 0
      %s24 = sadd.s32 %s23, 1
      %s25 = scalar_select %p22, %s23, %s24
      %p28 = pneg %p22
      %p29 = scmp.eq.s32.totalorder %s13, 1
      %p30 = por %p28, %p29
      %p31 = scmp.ne.s32.totalorder %s23, %s26
      %p32 = scmp.eq.s32.totalorder %s13, 0
      %p33 = por %p31, %p32
      %p34 = scmp.ne.s32.totalorder %s23, %s26
      %p35 = scmp.eq.s32.totalorder %s18, 1
      %p36 = por %p34, %p35
      %p37 = scmp.ne.s32.totalorder %s26, %s27
      %p38 = scmp.eq.s32.totalorder %s18, 0
      %p39 = por %p37, %p38
      %p40 = scmp.ne.s32.totalorder %s26, %s27
      %p41 = scmp.eq.s32.totalorder %s19, 1
      %p42 = por %p40, %p41
      %p44 = scmp.ne.s32.totalorder %s27, %s43
      %p45 = scmp.eq.s32.totalorder %s19, 0
      %p46 = por %p44, %p45
      %s47 = ssub.s32 %s13, %s20
      %p48 = scmp.eq.s32.totalorder %s47, 0
      %s50 = sadd.s32 %s49, 1
      %s51 = scalar_select %p48, %s49, %s50
      %p54 = pneg %p48
      %p55 = scmp.eq.s32.totalorder %s13, 1
      %p56 = por %p54, %p55
      %p57 = scmp.ne.s32.totalorder %s49, %s52
      %p58 = scmp.eq.s32.totalorder %s13, 0
      %p59 = por %p57, %p58
      %p60 = scmp.ne.s32.totalorder %s49, %s52
      %p61 = scmp.eq.s32.totalorder %s18, 1
      %p62 = por %p60, %p61
      %p63 = scmp.ne.s32.totalorder %s52, %s53
      %p64 = scmp.eq.s32.totalorder %s18, 0
      %p65 = por %p63, %p64
      %p66 = scmp.ne.s32.totalorder %s52, %s53
      %p67 = scmp.eq.s32.totalorder %s19, 1
      %p68 = por %p66, %p67
      %p70 = scmp.ne.s32.totalorder %s53, %s69
      %p71 = scmp.eq.s32.totalorder %s19, 0
      %p72 = por %p70, %p71
      %s73 = ssub.s32 %s13, %s20
      %p74 = scmp.eq.s32.totalorder %s73, 0
      %s76 = sadd.s32 %s75, 1
      %s77 = scalar_select %p74, %s75, %s76
      %p80 = pneg %p74
      %p81 = scmp.eq.s32.totalorder %s13, 1
      %p82 = por %p80, %p81
      %p83 = scmp.ne.s32.totalorder %s75, %s78
      %p84 = scmp.eq.s32.totalorder %s13, 0
      %p85 = por %p83, %p84
      %p86 = scmp.ne.s32.totalorder %s75, %s78
      %p87 = scmp.eq.s32.totalorder %s18, 1
      %p88 = por %p86, %p87
      %p89 = scmp.ne.s32.totalorder %s78, %s79
      %p90 = scmp.eq.s32.totalorder %s18, 0
      %p91 = por %p89, %p90
      %p92 = scmp.ne.s32.totalorder %s78, %s79
      %p93 = scmp.eq.s32.totalorder %s19, 1
      %p94 = por %p92, %p93
      %p96 = scmp.ne.s32.totalorder %s79, %s95
      %p97 = scmp.eq.s32.totalorder %s19, 0
      %p98 = por %p96, %p97
      %p99 = scmp.le.s32.totalorder 1, %s13
      %p100 = scmp.lt.s32.totalorder %s13, 3
      %p101 = pnand %p99, %p100
      %p102 = pneg %p101
      // Predicated region
      $region9: #{tpu_custom_call.1} parent=5 // pred_check
        _
      $region10: #{tpu_custom_call.1} parent=5 // pred_check_branch
        %104 = sbr.rel (%p101) target = $region12
      $region11: #{tpu_custom_call.1} parent=5 // pred_region
        %s105 = ssub.s32 %s13, 1
      $region12: #{tpu_custom_call.1} parent=5 // pred_fallthru
        _
      %p106 = scmp.lt.s32.totalorder %s13, 2
      // Predicated region
      $region13: #{tpu_custom_call.1} parent=5 // pred_check
        %p107 = pneg %p106
      $region14: #{tpu_custom_call.1} parent=5 // pred_check_branch
        %109 = sbr.rel (%p107) target = $region16
      $region15: #{tpu_custom_call.1} parent=5 // pred_region
        // Predicated region
        $region17: #{tpu_custom_call.1} parent=15 // pred_check
          %p110 = pneg %p33
        $region18: #{tpu_custom_call.1} parent=15 // pred_check_branch
          %112 = sbr.rel (%p110) target = $region20
        $region19: #{tpu_custom_call.1} parent=15 // pred_region
          %p113 = scmp.lt.s32.totalorder %s13, 1
          %s114 = scalar_select %p113, %s13, 1
          %s115 = smul.addr %s114, 8
          %s116 = scalar_lea.vmem %s1, %s115
        $region20: #{tpu_custom_call.1} parent=15 // pred_fallthru
          _
        // Predicated region
        $region21: #{tpu_custom_call.1} parent=15 // pred_check
          %p117 = pneg %p59
        $region22: #{tpu_custom_call.1} parent=15 // pred_check_branch
          %119 = sbr.rel (%p117) target = $region24
        $region23: #{tpu_custom_call.1} parent=15 // pred_region
          %p120 = scmp.lt.s32.totalorder %s13, 1
          %s121 = scalar_select %p120, %s13, 1
          %s122 = smul.addr %s121, 8
          %s123 = scalar_lea.vmem %s2, %s122
        $region24: #{tpu_custom_call.1} parent=15 // pred_fallthru
          _
      $region16: #{tpu_custom_call.1} parent=5 // pred_fallthru
        _
      %p124 = scmp.le.s32.totalorder 1, %s13
      %p125 = scmp.lt.s32.totalorder %s13, 3
      %p126 = pnand %p124, %p125
      %p127 = pneg %p126
      // Predicated region
      $region25: #{tpu_custom_call.1} parent=5 // pred_check
        _
      $region26: #{tpu_custom_call.1} parent=5 // pred_check_branch
        %129 = sbr.rel (%p126) target = $region28
      $region27: #{tpu_custom_call.1} parent=5 // pred_region
        %s130 = ssub.s32 %s13, 1
        %p131 = scmp.lt.s32.totalorder %s18, 1
        %s132 = scalar_select %p131, %s18, 1
        %s133 = smul.addr %s132, 8
        %s134 = scalar_lea.vmem %s1, %s133
        %p135 = pneg %p39
        %p136 = pneg %p36
        %p137 = scmp.lt.s32.totalorder %s18, 1
        %s138 = scalar_select %p137, %s18, 1
        %s139 = smul.addr %s138, 8
        %s140 = scalar_lea.vmem %s2, %s139
        %p141 = pneg %p65
        %p142 = pneg %p62
        %p143 = pneg %p91
        %p144 = pneg %p88
        %s145 = sand.u32 %s78, 1
        %s146 = scalar_lea.sflag [#allocation5], %s145
        %s147 = sand.u32 %s78, 1
        %s148 = smul.addr %s147, 8
        %s149 = scalar_lea.vmem [#allocation4], %s148
        %p150 = scmp.lt.s32.totalorder %s18, 1
        %s151 = scalar_select %p150, %s18, 1
        %s152 = smul.addr %s151, 8
        %s153 = scalar_lea.vmem %s1, %s152
        %p154 = scmp.lt.s32.totalorder %s18, 1
        %s155 = scalar_select %p154, %s18, 1
        %s156 = smul.addr %s155, 8
        %s157 = scalar_lea.vmem %s2, %s156
        %v158 = vld [vmem:[%s153] sm:$0xff]
        %v159 = vld [vmem:[%s157] sm:$0xff]
        %vm160 = vcmask 261120
        %v161 = vsel %vm160, %v158, -inf
        %162 = vmax.xlane.f32.xlu0 %v161
        %v163 = vpop.xlane.xlu0 %162
        %v164 = vsub.f32 %v158, %v163
        %v165 = vmul.f32 %v164, 1.442695
        %v166 = vpow.pop %v165
        %v167 = vsel %vm160, %v166, 0.0
        %168 = vadd.xlane.f32.xlu0 %v167
        %v169 = vpop.xlane.xlu0 %168
        %v170 = vlaneseq
        %v171 = vand.u32 %v170, 127
        %172 = vset.pattern.permute.xlu0 0
        %173 = vperm.xlu0 %172, %v159
        %v174 = vpop.permute.xlu0 %173
        %vm175 = vcmp.eq.s32.totalorder %v171, %v174
        %v176 = vsel %vm175, %v164, 0.0
        %v177 = vsel %vm160, %v176, 0.0
        %178 = vadd.xlane.f32.xlu0 %v177
        %v179 = vpop.xlane.xlu0 %178
        %v180 = vlog2.pop %v169
        %v181 = vmul.f32 %v180, 0.6931472
        %v182 = vsub.f32 %v181, %v179
        %s183 = sld [smem:[#allocation3]]
        %p184 = scmp.lt.s32.totalorder %s183, 0
        %s185 = ssub.s32 0, %s183
        %s186 = scalar_select %p184, %s185, %s183
        %s187 = sdiv.u32.pop %s186, 5
        %s188 = srem.u32.pop %s186, 5
        %s189 = ssub.s32 0, %s188
        %s190 = scalar_select %p184, %s189, %s188
        %p191 = scmp.ne.s32.totalorder %s190, 0
        %p192 = scmp.lt.s32.totalorder %s190, 0
        %p193 = pnand %p192, %p191
        %p194 = pneg %p193
        %s195 = sadd.s32 %s190, 5
        %s196 = scalar_select %p194, %s195, %s190
        %p197 = scmp.eq.s32.totalorder %s196, 0
        %p198 = scmp.le.s32.totalorder %s183, 80
        %vm199 = vcmp.eq.s32.totalorder %v159, 3
        %s200 = scalar_select %p198, 1, 0
        %v201 = vstv %s200
        %vm202 = vcmp.eq.s32.totalorder %v201, 1
        %vm203 = vmxor %vm199, %vm202
        %s204 = scalar_select %p197, 1, 0
        %v205 = vstv %s204
        %vm206 = vcmp.eq.s32.totalorder %v205, 1
        %vm207 = vmor %vm206, %vm203
        %s208 = smul.u32 %s18, 8
        %v209 = vlaneseq
        %v210 = vshrl.u32 %v209, 7
        %v211 = vstv %s208
        %v212 = vadd.s32 %v211, %v210
        %vm213 = vcmp.lt.s32.totalorder %v212, 13
        %vm214 = vmand %vm207, %vm213
        %v215 = vsel %vm214, %v182, 0.0
        %vm216 = vcmask 7168
        %v217 = vsel %vm216, %v215, 0.0
        %218 = vadd.xlane.f32.xlu0 %v217
        %v219 = vpop.xlane.xlu0 %218
        %v220 = vrot.slane %v219, 4
        %v221 = vadd.f32 %v219, %v220
        %v222 = vrot.slane %v221, 2
        %v223 = vadd.f32 %v221, %v222
        %v224 = vrot.slane %v223, 1
        %v225 = vadd.f32 %v223, %v224
        %s226 = vtos %v225
        %v227 = vstv %s226
        %228 = vst [vmem:[%s149] sm:$0xff] %v227
        %s229 = sand.u32 %s78, 1
        %s230 = scalar_lea.sflag [#allocation5], %s229
        %s231 = sand.u32 %s78, 1
        %s232 = smul.addr %s231, 8
        %s233 = scalar_lea.vmem [#allocation4], %s232
        // Predicated region
        $region29: #{tpu_custom_call.1} parent=27 // pred_check
          %p234 = pneg %p88
        $region30: #{tpu_custom_call.1} parent=27 // pred_check_branch
          %236 = sbr.rel (%p234) target = $region32
        $region31: #{tpu_custom_call.1} parent=27 // pred_region
          %s238 = ssub.s32 128, 128
          %239 = vsyncadd %s230, %s238
          %s240 = smul.addr %s18, 128
          %s241 = scalar_lea.hbm %s3, %s240
          %s243 = sshll.u32 %s233, 4
          %s244 = int_to_ptr.vmem [resolvable:$true] %s243
          %246 = dma.vmem_to_hbm [thread:$0]  %s244, 128, %s241, %s230
        $region32: #{tpu_custom_call.1} parent=27 // pred_fallthru
          _
      $region28: #{tpu_custom_call.1} parent=5 // pred_fallthru
        _
      %p247 = scmp.le.s32.totalorder 2, %s13
      // Predicated region
      $region33: #{tpu_custom_call.1} parent=5 // pred_check
        %p248 = pneg %p247
      $region34: #{tpu_custom_call.1} parent=5 // pred_check_branch
        %250 = sbr.rel (%p248) target = $region36
      $region35: #{tpu_custom_call.1} parent=5 // pred_region
        %s251 = ssub.s32 %s13, 2
        // Predicated region
        $region37: #{tpu_custom_call.1} parent=35 // pred_check
          %p252 = pneg %p94
        $region38: #{tpu_custom_call.1} parent=35 // pred_check_branch
          %254 = sbr.rel (%p252) target = $region40
        $region39: #{tpu_custom_call.1} parent=35 // pred_region
          %s255 = sand.u32 %s79, 1
          %s256 = scalar_lea.sflag [#allocation5], %s255
          %s257 = sand.u32 %s79, 1
          %s258 = smul.addr %s257, 8
          %s259 = scalar_lea.vmem [#allocation4], %s258
          %260 = dma.done %s256, 128
        $region40: #{tpu_custom_call.1} parent=35 // pred_fallthru
          _
      $region36: #{tpu_custom_call.1} parent=5 // pred_fallthru
        _
    $region6: #{tpu_custom_call.1} parent=1 // loop_footer
      %s17 = sadd.s32 1, %s13
    $region7: #{tpu_custom_call.1} parent=1 // loop_footer_branch
      %12 = sbr.rel target = $region3
    $region8: #{tpu_custom_call.1} parent=1 // loop_exit
      _
    %261 = vsyncpa [#allocation5], 1
    %s262 = scalar_lea.sflag [#allocation5], 1
    %263 = vsyncpa %s262, 1

</llo_original>
